<compile_context>
chip_gen: v6e
topology: v6e:2x2x1
jax: 0.10.0
libtpu: 0.0.40
codegen_flags: <defaults>
</compile_context>

<pallas_src>
import jax
import jax.numpy as jnp
from jax.experimental import pallas as pl
from jax.experimental.pallas import tpu as pltpu


def _round_up(n, m):
    return ((n + m - 1) // m) * m


def simplenet_kernel(x_ref, w1_ref, b1_ref, w2_ref, b2_ref, w3_ref, b3_ref, o_ref):
    """Fused 3-layer MLP on one (TB, *) batch tile.

    x_ref : (TB, 2)  f32       w1_ref: (2, Hp) f32    b1_ref: (1, Hp) f32
    w2_ref: (Hp, Hp) f32|bf16  b2_ref: (1, Hp) f32
    w3_ref: (1, Hp)  f32       b3_ref: (1, 1)  f32
    o_ref : (TB, 1)  f32
    """
    x = x_ref[...]

    # Layer 1 (K=2): two broadcast multiply-adds on the VPU.  A K=2 matmul
    # would still pay a full MXU push/pop for 2 live sublanes of work.
    h1 = (x[:, 0:1] * w1_ref[0:1, :]
          + x[:, 1:2] * w1_ref[1:2, :]
          + b1_ref[...])
    h1 = jnp.maximum(h1, 0.0)

    # Layer 2: the only real matmul -> MXU, f32 accumulation.  Operand dtype
    # follows w2 (f32 by default; bf16 on v6e/v7x when requested by wrapper).
    h2 = jnp.dot(h1.astype(w2_ref.dtype), w2_ref[...],
                 preferred_element_type=jnp.float32) + b2_ref[...]
    h2 = jnp.maximum(h2, 0.0)

    # Layer 3 (N=1): VPU multiply + cross-lane (XLU) reduction instead of a
    # 1-column MXU matmul.
    y = jnp.sum(h2 * w3_ref[...], axis=-1, keepdims=True) + b3_ref[...]   # (TB, 1)

    # Narrow (TB, 1) store: 4 B/row HBM writeback (vs 512 B/row for the old
    # 128-lane broadcast output).
    o_ref[...] = y.astype(o_ref.dtype)


def simplenet_forward(x, params, *, tile_b=2048, matmul_dtype=jnp.float32):
    """x: (B, 2) float32. params: weights pre-transposed to (in, out) layout."""
    w1, b1, w2, b2, w3, b3 = (
        params["w1"], params["b1"], params["w2"], params["b2"],
        params["w3"], params["b3"],
    )
    B = x.shape[0]
    H = w1.shape[1]

    # Lane-align hidden dim with zero padding (numerically exact: padded
    # biases are 0, ReLU(0)=0, padded w3 lanes are 0).  128 for small H;
    # 256 for larger H so the 256-wide v6e/v7x MXU is fully fed.
    align = 128 if H <= 128 else 256
    Hp = _round_up(max(H, 128), align)
    dH = Hp - H
    w1p = jnp.pad(w1, ((0, 0), (0, dH)))
    b1p = jnp.pad(b1, ((0, 0), (0, dH)))
    w2p = jnp.pad(w2, ((0, dH), (0, dH))).astype(matmul_dtype)
    b2p = jnp.pad(b2, ((0, 0), (0, dH)))
    w3p = jnp.pad(w3.reshape(1, H), ((0, 0), (0, dH)))   # (1, Hp) row for VPU layer 3
    b3p = b3.reshape(1, 1)

    # Batch tiling: TB is a multiple of 8 sublanes.  When B is large, cap TB
    # so the grid has at least 2 independent "parallel" steps -> both v7x TCs.
    B8 = _round_up(B, 8)
    TB = _round_up(min(tile_b, B8), 8)
    if B8 >= 256:
        TB = min(TB, _round_up(pl.cdiv(B8, 2), 8))
    B_pad = _round_up(B8, TB)
    if B_pad != B:
        x = jnp.pad(x, ((0, B_pad - B), (0, 0)))
    grid = (B_pad // TB,)

    flops = 2 * B_pad * Hp * (2 + Hp + 1)
    bytes_accessed = (4 * B_pad * 2                          # x
                      + w2p.size * w2p.dtype.itemsize        # w2
                      + 4 * (2 * Hp + 3 * Hp + 1)            # w1, b1, b2, w3, b3
                      + 4 * B_pad * 1)                       # out (narrow layout)

    # Scoped-VMEM estimate: double-buffered x/out tiles (lane-padded in VMEM),
    # double-buffered resident weights, live f32 intermediates.  Only raise
    # the limit when the conservative default scoped VMEM would be tight.
    vmem_est = (2 * 2 * TB * 128 * 4
                + 2 * w2p.size * w2p.dtype.itemsize
                + 3 * TB * Hp * 4
                + 2 * 8 * Hp * 4)
    vmem_limit = None
    if vmem_est > (16 << 20):
        vmem_limit = int(min(_round_up(2 * vmem_est, 1 << 20), 64 << 20))

    out = pl.pallas_call(
        simplenet_kernel,
        out_shape=jax.ShapeDtypeStruct((B_pad, 1), jnp.float32),
        grid=grid,
        in_specs=[
            pl.BlockSpec((TB, 2), lambda i: (i, 0)),     # x: tiled over batch
            pl.BlockSpec((2, Hp), lambda i: (0, 0)),     # weights/biases stay
            pl.BlockSpec((1, Hp), lambda i: (0, 0)),     # VMEM-resident
            pl.BlockSpec((Hp, Hp), lambda i: (0, 0)),    # (constant block idx
            pl.BlockSpec((1, Hp), lambda i: (0, 0)),     #  -> DMA'd once)
            pl.BlockSpec((1, Hp), lambda i: (0, 0)),
            pl.BlockSpec((1, 1), lambda i: (0, 0)),
        ],
        out_specs=pl.BlockSpec((TB, 1), lambda i: (i, 0)),
        compiler_params=pltpu.CompilerParams(
            # batch tiles are independent -> megacore-shardable on v7x.
            dimension_semantics=("parallel",),
            vmem_limit_bytes=vmem_limit,
        ),
        cost_estimate=pl.CostEstimate(
            flops=flops, transcendentals=0, bytes_accessed=bytes_accessed),
    )(x, w1p, b1p, w2p, b2p, w3p, b3p)

    return out[:B]


def init_params(hidden, key):
    """Deterministic init matching nn.Linear shapes (stored pre-transposed as (in, out))."""
    ks = jax.random.split(key, 6)

    def linear(kw, kb, fan_in, fan_out):
        bound = 1.0 / jnp.sqrt(fan_in)
        # PyTorch stores W as (out, in); we transpose to (in, out) for x @ W.
        w = jax.random.uniform(kw, (fan_in, fan_out), jnp.float32, -bound, bound)
        b = jax.random.uniform(kb, (1, fan_out), jnp.float32, -bound, bound)
        return w, b

    w1, b1 = linear(ks[0], ks[1], 2, hidden)
    w2, b2 = linear(ks[2], ks[3], hidden, hidden)
    w3, b3 = linear(ks[4], ks[5], hidden, 1)
    return {"w1": w1, "b1": b1, "w2": w2, "b2": b2, "w3": w3, "b3": b3}


def reference_forward(x, p):
    h1 = jnp.maximum(x @ p["w1"] + p["b1"], 0.0)
    h2 = jnp.maximum(h1 @ p["w2"] + p["b2"], 0.0)
    return h2 @ p["w3"] + p["b3"]


if __name__ == "__main__":
    hidden = 32
    batch = 8

    key = jax.random.PRNGKey(0)
    kx, kp = jax.random.split(key)
    x = jax.random.normal(kx, (batch, 2), dtype=jnp.float32)
    params = init_params(hidden, kp)

    # f32 matmul path keeps the 1e-5 tolerance exact (use
    # matmul_dtype=jnp.bfloat16 on v6e/v7x for scaled-up H).
    out = simplenet_forward(x, params)
    out = jax.block_until_ready(out)

    ref = reference_forward(x, params)
    assert out.shape == (batch, 1)
    assert jnp.allclose(out, ref, atol=1e-5, rtol=1e-5)

    print("KERNEL_OK")
</pallas_src>

<mosaic_0001>
module attributes {stable_mosaic.version = 11 : i64} {
  func.func @simplenet_kernel(%arg0: i32, %arg1: memref<8x2xf32, #tpu.memory_space<vmem>>, %arg2: memref<2x128xf32, #tpu.memory_space<vmem>>, %arg3: memref<1x128xf32, #tpu.memory_space<vmem>>, %arg4: memref<128x128xf32, #tpu.memory_space<vmem>>, %arg5: memref<1x128xf32, #tpu.memory_space<vmem>>, %arg6: memref<1x128xf32, #tpu.memory_space<vmem>>, %arg7: memref<1x1xf32, #tpu.memory_space<vmem>>, %arg8: memref<8x1xf32, #tpu.memory_space<vmem>>) attributes {dimension_semantics = [#tpu.dimension_semantics<parallel>], iteration_bounds = array<i64: 1>, scalar_prefetch = 0 : i64, scratch_operands = 0 : i64, tpu.core_type = #tpu.core_type<tc>, window_params = [{transform_indices = @transform_0, window_bounds = array<i64: 8, 2>}, {pipeline_mode = #tpu.pipeline_mode<synchronous>, transform_indices = @transform_1, window_bounds = array<i64: 2, 128>}, {pipeline_mode = #tpu.pipeline_mode<synchronous>, transform_indices = @transform_2, window_bounds = array<i64: 1, 128>}, {pipeline_mode = #tpu.pipeline_mode<synchronous>, transform_indices = @transform_3, window_bounds = array<i64: 128, 128>}, {pipeline_mode = #tpu.pipeline_mode<synchronous>, transform_indices = @transform_4, window_bounds = array<i64: 1, 128>}, {pipeline_mode = #tpu.pipeline_mode<synchronous>, transform_indices = @transform_5, window_bounds = array<i64: 1, 128>}, {pipeline_mode = #tpu.pipeline_mode<synchronous>, transform_indices = @transform_6, window_bounds = array<i64: 1, 1>}, {transform_indices = @transform_7, window_bounds = array<i64: 8, 1>}]} {
    %c0 = arith.constant 0 : index
    %c0_0 = arith.constant 0 : index
    %0 = vector.load %arg1[%c0, %c0_0] : memref<8x2xf32, #tpu.memory_space<vmem>>, vector<8x2xf32>
    %1 = vector.extract_strided_slice %0 {offsets = [0, 0], sizes = [8, 1], strides = [1, 1]} : vector<8x2xf32> to vector<8x1xf32>
    %c0_1 = arith.constant 0 : index
    %c0_2 = arith.constant 0 : index
    %2 = vector.load %arg2[%c0_1, %c0_2] : memref<2x128xf32, #tpu.memory_space<vmem>>, vector<1x128xf32>
    %3 = vector.broadcast %1 : vector<8x1xf32> to vector<8x128xf32>
    %4 = vector.broadcast %2 : vector<1x128xf32> to vector<8x128xf32>
    %5 = arith.mulf %3, %4 : vector<8x128xf32>
    %6 = vector.extract_strided_slice %0 {offsets = [0, 1], sizes = [8, 1], strides = [1, 1]} : vector<8x2xf32> to vector<8x1xf32>
    %c1 = arith.constant 1 : index
    %c0_3 = arith.constant 0 : index
    %7 = vector.load %arg2[%c1, %c0_3] : memref<2x128xf32, #tpu.memory_space<vmem>>, vector<1x128xf32>
    %8 = vector.broadcast %6 : vector<8x1xf32> to vector<8x128xf32>
    %9 = vector.broadcast %7 : vector<1x128xf32> to vector<8x128xf32>
    %10 = arith.mulf %8, %9 : vector<8x128xf32>
    %11 = arith.addf %5, %10 : vector<8x128xf32>
    %c0_4 = arith.constant 0 : index
    %c0_5 = arith.constant 0 : index
    %12 = vector.load %arg3[%c0_4, %c0_5] : memref<1x128xf32, #tpu.memory_space<vmem>>, vector<1x128xf32>
    %13 = vector.broadcast %12 : vector<1x128xf32> to vector<8x128xf32>
    %14 = arith.addf %11, %13 : vector<8x128xf32>
    %cst = arith.constant 0.000000e+00 : f32
    %15 = vector.broadcast %cst : f32 to vector<8x128xf32>
    %16 = arith.maximumf %14, %15 : vector<8x128xf32>
    %c0_6 = arith.constant 0 : index
    %c0_7 = arith.constant 0 : index
    %17 = vector.load %arg4[%c0_6, %c0_7] : memref<128x128xf32, #tpu.memory_space<vmem>>, vector<128x128xf32>
    %cst_8 = arith.constant dense<0.000000e+00> : vector<8x128xf32>
    %18 = tpu.matmul %16, %17, %cst_8 {dimension_numbers = #tpu.dot_dimension_numbers<[1], [0], [0], [1], [0, 0, 1, 1], [], []>} : vector<8x128xf32>, vector<128x128xf32>, vector<8x128xf32> -> vector<8x128xf32>
    %c0_9 = arith.constant 0 : index
    %c0_10 = arith.constant 0 : index
    %19 = vector.load %arg5[%c0_9, %c0_10] : memref<1x128xf32, #tpu.memory_space<vmem>>, vector<1x128xf32>
    %20 = vector.broadcast %19 : vector<1x128xf32> to vector<8x128xf32>
    %21 = arith.addf %18, %20 : vector<8x128xf32>
    %cst_11 = arith.constant 0.000000e+00 : f32
    %22 = vector.broadcast %cst_11 : f32 to vector<8x128xf32>
    %23 = arith.maximumf %21, %22 : vector<8x128xf32>
    %c0_12 = arith.constant 0 : index
    %c0_13 = arith.constant 0 : index
    %24 = vector.load %arg6[%c0_12, %c0_13] : memref<1x128xf32, #tpu.memory_space<vmem>>, vector<1x128xf32>
    %25 = vector.broadcast %24 : vector<1x128xf32> to vector<8x128xf32>
    %26 = arith.mulf %23, %25 : vector<8x128xf32>
    %cst_14 = arith.constant dense<0.000000e+00> : vector<8xf32>
    %27 = vector.multi_reduction <add>, %26, %cst_14 [1] : vector<8x128xf32> to vector<8xf32>
    %28 = vector.shape_cast %27 : vector<8xf32> to vector<8x1xf32>
    %c0_15 = arith.constant 0 : index
    %c0_16 = arith.constant 0 : index
    %29 = vector.load %arg7[%c0_15, %c0_16] : memref<1x1xf32, #tpu.memory_space<vmem>>, vector<1x1xf32>
    %30 = vector.broadcast %29 : vector<1x1xf32> to vector<8x1xf32>
    %31 = arith.addf %28, %30 : vector<8x1xf32>
    %c0_17 = arith.constant 0 : index
    %c0_18 = arith.constant 0 : index
    %32 = vector.load %arg8[%c0_17, %c0_18] : memref<8x1xf32, #tpu.memory_space<vmem>>, vector<8x1xf32>
    tpu.vector_store %arg8[%c0_17, %c0_18], %31 {strides = array<i32>} : memref<8x1xf32, #tpu.memory_space<vmem>>, vector<8x1xf32>,
    return
  }
  func.func @transform_0(%arg0: i32) -> (i32, i32) {
    %c0_i32 = arith.constant 0 : i32
    %c0_i32_0 = arith.constant 0 : i32
    return %arg0, %c0_i32 : i32, i32
  }
  func.func @transform_1(%arg0: i32) -> (i32, i32) {
    %c0_i32 = arith.constant 0 : i32
    %c0_i32_0 = arith.constant 0 : i32
    %c0_i32_1 = arith.constant 0 : i32
    return %c0_i32, %c0_i32_0 : i32, i32
  }
  func.func @transform_2(%arg0: i32) -> (i32, i32) {
    %c0_i32 = arith.constant 0 : i32
    %c0_i32_0 = arith.constant 0 : i32
    %c0_i32_1 = arith.constant 0 : i32
    return %c0_i32, %c0_i32_0 : i32, i32
  }
  func.func @transform_3(%arg0: i32) -> (i32, i32) {
    %c0_i32 = arith.constant 0 : i32
    %c0_i32_0 = arith.constant 0 : i32
    %c0_i32_1 = arith.constant 0 : i32
    return %c0_i32, %c0_i32_0 : i32, i32
  }
  func.func @transform_4(%arg0: i32) -> (i32, i32) {
    %c0_i32 = arith.constant 0 : i32
    %c0_i32_0 = arith.constant 0 : i32
    %c0_i32_1 = arith.constant 0 : i32
    return %c0_i32, %c0_i32_0 : i32, i32
  }
  func.func @transform_5(%arg0: i32) -> (i32, i32) {
    %c0_i32 = arith.constant 0 : i32
    %c0_i32_0 = arith.constant 0 : i32
    %c0_i32_1 = arith.constant 0 : i32
    return %c0_i32, %c0_i32_0 : i32, i32
  }
  func.func @transform_6(%arg0: i32) -> (i32, i32) {
    %c0_i32 = arith.constant 0 : i32
    %c0_i32_0 = arith.constant 0 : i32
    %c0_i32_1 = arith.constant 0 : i32
    return %c0_i32, %c0_i32_0 : i32, i32
  }
  func.func @transform_7(%arg0: i32) -> (i32, i32) {
    %c0_i32 = arith.constant 0 : i32
    %c0_i32_0 = arith.constant 0 : i32
    return %arg0, %c0_i32 : i32, i32
  }
}

</mosaic_0001>

<llo_original>
// kernel: tpu_custom_call.1
$region0: #{tpu_custom_call.1}
  #allocation0 [shape = 'u32[]', space=smem, size = 0x4, offset = 0x4, fixed_abs, tag = 'smem constant byte address 0x4 - core index']
  #allocation1 [shape = 'u32[144,128]{1,0:T(1,128)}', space=vmem, size = 0x12000, scoped, tag = 'internal scratch']
  #allocation2 [shape = 'f32[1,1]{1,0:T(1,128)S(1)}', space=vmem, size = 0x200, scoped, tag = 'scoped memory for tpu_custom_call.1']
  %s0 = inlined_call_operand.vmem [shape: f32[8,2], index: 0, kind: input, shape index: {}]
  %s1 = inlined_call_operand.vmem [shape: f32[2,128], index: 1, kind: input, shape index: {}]
  %s2 = inlined_call_operand.vmem [shape: f32[1,128], index: 2, kind: input, shape index: {}]
  %s3 = inlined_call_operand.hbm [shape: f32[128,128], index: 3, kind: input, shape index: {}]
  %s4 = inlined_call_operand.vmem [shape: f32[1,128], index: 4, kind: input, shape index: {}]
  %s5 = inlined_call_operand.vmem [shape: f32[1,128], index: 5, kind: input, shape index: {}]
  %s6 = inlined_call_operand.<no memory space> [shape: f32[1,1], index: 6, kind: input, shape index: {}]
  %s7 = inlined_call_operand.vmem [shape: f32[8,1], index: 7, kind: output, shape index: {}]
  %s8 = sld [smem:[#allocation0]]
  $region42: #{tpu_custom_call.1} parent=0
    _
  %s10 = ssub.s32 1, %s8
  %s11 = scalar_select 0, %s10, %s8
  %v12 = vstv %s6
  %13 = vst [vmem:[#allocation2] sm:$0x1] %v12
  $region1: #{tpu_custom_call.1} parent=0
    #allocation3 [shape = 'u8[65536]{0}', space=vmem, size = 0x10000, scoped, tag = 'input window, operand 3, single buffered']
    #allocation4 [shape = 's32[1]{0}', space=sflag, size = 0x4, scoped, tag = 'scoped memory for tpu_custom_call.1']
    %14 = vsyncpa [#allocation4], 0
    // Predicated region
    $region2: #{tpu_custom_call.1} parent=1 // pred_check
      _
    $region3: #{tpu_custom_call.1} parent=1 // pred_check_branch
      %16 = sbr.rel (0) target = $region5
    $region4: #{tpu_custom_call.1} parent=1 // pred_region
      _
    $region5: #{tpu_custom_call.1} parent=1 // pred_fallthru
      _
    // Predicated region
    $region6: #{tpu_custom_call.1} parent=1 // pred_check
      _
    $region7: #{tpu_custom_call.1} parent=1 // pred_check_branch
      %18 = sbr.rel (0) target = $region9
    $region8: #{tpu_custom_call.1} parent=1 // pred_region
      _
    $region9: #{tpu_custom_call.1} parent=1 // pred_fallthru
      _
    // Predicated region
    $region10: #{tpu_custom_call.1} parent=1 // pred_check
      _
    $region11: #{tpu_custom_call.1} parent=1 // pred_check_branch
      %20 = sbr.rel (0) target = $region13
    $region12: #{tpu_custom_call.1} parent=1 // pred_region
      _
    $region13: #{tpu_custom_call.1} parent=1 // pred_fallthru
      _
    // Predicated region
    $region14: #{tpu_custom_call.1} parent=1 // pred_check
      _
    $region15: #{tpu_custom_call.1} parent=1 // pred_check_branch
      %22 = sbr.rel (0) target = $region17
    $region16: #{tpu_custom_call.1} parent=1 // pred_region
      %s24 = ssub.s32 2048, 2048
      %25 = vsyncadd [#allocation4], %s24
      %s26 = sshll.u32 [#allocation3], 4
      %s27 = int_to_ptr.vmem [resolvable:$true] %s26
      %32 = dma.hbm_to_vmem [thread:$0]  %s3, 2048, %s27, [#allocation4], 128, 128, 8
    $region17: #{tpu_custom_call.1} parent=1 // pred_fallthru
      _
    // Predicated region
    $region18: #{tpu_custom_call.1} parent=1 // pred_check
      _
    $region19: #{tpu_custom_call.1} parent=1 // pred_check_branch
      %34 = sbr.rel (0) target = $region21
    $region20: #{tpu_custom_call.1} parent=1 // pred_region
      _
    $region21: #{tpu_custom_call.1} parent=1 // pred_fallthru
      _
    // Predicated region
    $region22: #{tpu_custom_call.1} parent=1 // pred_check
      _
    $region23: #{tpu_custom_call.1} parent=1 // pred_check_branch
      %36 = sbr.rel (0) target = $region25
    $region24: #{tpu_custom_call.1} parent=1 // pred_region
      _
    $region25: #{tpu_custom_call.1} parent=1 // pred_fallthru
      _
    // Predicated region
    $region26: #{tpu_custom_call.1} parent=1 // pred_check
      _
    $region27: #{tpu_custom_call.1} parent=1 // pred_check_branch
      %38 = sbr.rel (0) target = $region29
    $region28: #{tpu_custom_call.1} parent=1 // pred_region
      _
    $region29: #{tpu_custom_call.1} parent=1 // pred_fallthru
      _
    // Predicated region
    $region30: #{tpu_custom_call.1} parent=1 // pred_check
      _
    $region31: #{tpu_custom_call.1} parent=1 // pred_check_branch
      %40 = sbr.rel (0) target = $region33
    $region32: #{tpu_custom_call.1} parent=1 // pred_region
      %41 = dma.done [#allocation4], 2048
    $region33: #{tpu_custom_call.1} parent=1 // pred_fallthru
      _
    %v42 = vld [vmem:[%s0] sm:$0xff]
    %v43 = vld [vmem:[%s1] sm:$0x1]
    %45 = vset.pattern.permute.xlu0 0
    %46 = vperm.xlu0 %45, %v42
    %v47 = vpop.permute.xlu0 %46
    %v49 = vlaneseq
    %v50 = vshrl.u32 %v49, 7
    %v51 = vsub.s32 0, %v50
    %v52 = vrot.slane %v43, %v51
    %v53 = vmul.f32 %v47, %v52
    %v54 = vld [vmem:[%s1 + $0x1] sm:$0x1]
    %55 = vset.pattern.permute.xlu0 1
    %56 = vperm.xlu0 %55, %v42
    %v57 = vpop.permute.xlu0 %56
    %v59 = vlaneseq
    %v60 = vshrl.u32 %v59, 7
    %v61 = vsub.s32 0, %v60
    %v62 = vrot.slane %v54, %v61
    %v63 = vmul.f32 %v57, %v62
    %v64 = vadd.f32 %v53, %v63
    %v65 = vld [vmem:[%s2] sm:$0x1]
    %v67 = vlaneseq
    %v68 = vshrl.u32 %v67, 7
    %v69 = vsub.s32 0, %v68
    %v70 = vrot.slane %v65, %v69
    %v72 = vadd.f32 %v64, %v70
    %v73 = vmax.f32 %v72, 0.0
    %v74 = vld [vmem:[#allocation3] sm:$0xff]
    %v75 = vld [vmem:[#allocation3 + $0x8] sm:$0xff]
    %v76 = vld [vmem:[#allocation3 + $0x10] sm:$0xff]
    %v77 = vld [vmem:[#allocation3 + $0x18] sm:$0xff]
    %v78 = vld [vmem:[#allocation3 + $0x20] sm:$0xff]
    %v79 = vld [vmem:[#allocation3 + $0x28] sm:$0xff]
    %v80 = vld [vmem:[#allocation3 + $0x30] sm:$0xff]
    %v81 = vld [vmem:[#allocation3 + $0x38] sm:$0xff]
    %v82 = vld [vmem:[#allocation3 + $0x40] sm:$0xff]
    %v83 = vld [vmem:[#allocation3 + $0x48] sm:$0xff]
    %v84 = vld [vmem:[#allocation3 + $0x50] sm:$0xff]
    %v85 = vld [vmem:[#allocation3 + $0x58] sm:$0xff]
    %v86 = vld [vmem:[#allocation3 + $0x60] sm:$0xff]
    %v87 = vld [vmem:[#allocation3 + $0x68] sm:$0xff]
    %v88 = vld [vmem:[#allocation3 + $0x70] sm:$0xff]
    %v89 = vld [vmem:[#allocation3 + $0x78] sm:$0xff]
    %v90 = vld [vmem:[%s4] sm:$0x1]
    %v92 = vlaneseq
    %v93 = vshrl.u32 %v92, 7
    %v94 = vsub.s32 0, %v93
    %v95 = vrot.slane %v90, %v94
    %97 = vmatprep.subr.mxu0 0.0
    %98 = vmatpush1.msra.mxu0 %v89
    %99 = vmatprep.subr.mxu0 0.0
    %100 = vmatpush1.msra.mxu0 %v88
    %101 = vmatprep.subr.mxu0 0.0
    %102 = vmatpush1.msra.mxu0 %v87
    %103 = vmatprep.subr.mxu0 0.0
    %104 = vmatpush1.msra.mxu0 %v86
    %105 = vmatprep.subr.mxu0 0.0
    %106 = vmatpush1.msra.mxu0 %v85
    %107 = vmatprep.subr.mxu0 0.0
    %108 = vmatpush1.msra.mxu0 %v84
    %109 = vmatprep.subr.mxu0 0.0
    %110 = vmatpush1.msra.mxu0 %v83
    %111 = vmatprep.subr.mxu0 0.0
    %112 = vmatpush1.msra.mxu0 %v82
    %113 = vmatprep.subr.mxu0 0.0
    %114 = vmatpush1.msra.mxu0 %v81
    %115 = vmatprep.subr.mxu0 0.0
    %116 = vmatpush1.msra.mxu0 %v80
    %117 = vmatprep.subr.mxu0 0.0
    %118 = vmatpush1.msra.mxu0 %v79
    %119 = vmatprep.subr.mxu0 0.0
    %120 = vmatpush1.msra.mxu0 %v78
    %121 = vmatprep.subr.mxu0 0.0
    %122 = vmatpush1.msra.mxu0 %v77
    %123 = vmatprep.subr.mxu0 0.0
    %124 = vmatpush1.msra.mxu0 %v76
    %125 = vmatprep.subr.mxu0 0.0
    %126 = vmatpush1.msra.mxu0 %v75
    %127 = vmatprep.subr.mxu0 0.0
    %128 = vmatpush1.msra.mxu0 %v74
    %129 = vmatprep.subr.mxu0 0.0
    %130 = vmatpush2.msra.mxu0 0.0
    %131 = vmatprep.subr.mxu0 0.0
    %132 = vmatpush2.msra.mxu0 0.0
    %133 = vmatprep.subr.mxu0 0.0
    %134 = vmatpush2.msra.mxu0 0.0
    %135 = vmatprep.subr.mxu0 0.0
    %136 = vmatpush2.msra.mxu0 0.0
    %137 = vmatprep.subr.mxu0 0.0
    %138 = vmatpush2.msra.mxu0 0.0
    %139 = vmatprep.subr.mxu0 0.0
    %140 = vmatpush2.msra.mxu0 0.0
    %141 = vmatprep.subr.mxu0 0.0
    %142 = vmatpush2.msra.mxu0 0.0
    %143 = vmatprep.subr.mxu0 0.0
    %144 = vmatpush2.msra.mxu0 0.0
    %145 = vmatprep.subr.mxu0 0.0
    %146 = vmatpush2.msra.mxu0 0.0
    %147 = vmatprep.subr.mxu0 0.0
    %148 = vmatpush2.msra.mxu0 0.0
    %149 = vmatprep.subr.mxu0 0.0
    %150 = vmatpush2.msra.mxu0 0.0
    %151 = vmatprep.subr.mxu0 0.0
    %152 = vmatpush2.msra.mxu0 0.0
    %153 = vmatprep.subr.mxu0 0.0
    %154 = vmatpush2.msra.mxu0 0.0
    %155 = vmatprep.subr.mxu0 0.0
    %156 = vmatpush2.msra.mxu0 0.0
    %157 = vmatprep.subr.mxu0 0.0
    %158 = vmatpush2.msra.mxu0 0.0
    %159 = vmatprep.subr.mxu0 0.0
    %160 = vmatpush2.msra.mxu0 0.0
    %161 = vmatprep.mubr.f32.mxu0 0.0
    %162 = vmatmul.mubr.f32.gmra.mxu0 %v73
    %v163 = vpop.f32.mrf.mxu0
    %v164 = vadd.f32 %v95, %v163
    %v165 = vpop.f32.mrf.mxu0
    %166 = vdwg.mxu0
    %v167 = vmax.f32 %v164, 0.0
    %v168 = vld [vmem:[%s5] sm:$0x1]
    %v170 = vlaneseq
    %v171 = vshrl.u32 %v170, 7
    %v172 = vsub.s32 0, %v171
    %v173 = vrot.slane %v168, %v172
    %v175 = vmul.f32 %v167, %v173
    %176 = vadd.xlane.f32.xlu0 %v175
    %v177 = vpop.xlane.xlu0 %176
    %v178 = vld [vmem:[#allocation2] sm:$0x1]
    %v180 = vlaneseq
    %v181 = vshrl.u32 %v180, 7
    %v182 = vsub.s32 0, %v181
    %v183 = vrot.slane %v178, %v182
    %v185 = vadd.f32 %v177, %v183
    %vm186 = vcmask 7168
    %187 = vst.msk [vmem:[%s7] sm:$0xff] %vm186, %v185
    // Predicated region
    $region34: #{tpu_custom_call.1} parent=1 // pred_check
      _
    $region35: #{tpu_custom_call.1} parent=1 // pred_check_branch
      %189 = sbr.rel (0) target = $region37
    $region36: #{tpu_custom_call.1} parent=1 // pred_region
      _
    $region37: #{tpu_custom_call.1} parent=1 // pred_fallthru
      _
    // Predicated region
    $region38: #{tpu_custom_call.1} parent=1 // pred_check
      _
    $region39: #{tpu_custom_call.1} parent=1 // pred_check_branch
      %191 = sbr.rel (0) target = $region41
    $region40: #{tpu_custom_call.1} parent=1 // pred_region
      _
    $region41: #{tpu_custom_call.1} parent=1 // pred_fallthru
      _
    %192 = vsyncpa [#allocation4], 1

</llo_original>
